<compile_context>
chip_gen: v7x
topology: tpu7x:2x2x1
jax: 0.10.0
libtpu: 0.0.40
codegen_flags: <defaults>
</compile_context>

<pallas_src>
import functools

import jax
import jax.numpy as jnp
from jax.experimental import pallas as pl
from jax.experimental.pallas import tpu as pltpu

LANE = 128           # lane width (last dim tiling)
SUBLANE_BF16 = 16    # bf16 sublane packing (second-minor dim tiling)


def _round_up(n: int, m: int) -> int:
    return ((n + m - 1) // m) * m


def _tpu_config():
    """Per-generation (VMEM budget, small-VMEM/multi-TC hint)."""
    cap = 128 * 1024 * 1024
    try:
        info = pltpu.get_tpu_info()
        cap = int(getattr(info, "vmem_capacity_bytes", cap))
    except Exception:
        pass
    # v7x: 64 MiB VMEM per TensorCore and 2 TCs/chip; v5e/v6e: 128 MiB, 1 TC.
    is_small_vmem = cap <= 64 * 1024 * 1024
    budget = min((cap * 3) // 4, 100 * 1024 * 1024)
    return budget, is_small_vmem


def _resident_spec(block_shape, index_map):
    """BlockSpec for a grid-invariant operand: single-buffered (no point
    double-buffering a block whose index never changes)."""
    if hasattr(pl, "Buffered"):
        try:
            return pl.BlockSpec(block_shape, index_map,
                                pipeline_mode=pl.Buffered(1))
        except TypeError:
            pass
    return pl.BlockSpec(block_shape, index_map)


# --------------------------------------------------------------------------
# Kernels
# --------------------------------------------------------------------------
def _mlp_kernel_resident(x_ref, w1_ref, b1_ref, w2_ref, b2_ref, o_ref):
    # fc1: bf16 operands, f32 accumulate; bias + ReLU epilogue stays in f32.
    h = jnp.dot(x_ref[...], w1_ref[...], preferred_element_type=jnp.float32)
    h = jnp.maximum(h + b1_ref[...], 0.0)
    # fc2
    y = jnp.dot(h.astype(w2_ref.dtype), w2_ref[...],
                preferred_element_type=jnp.float32)
    o_ref[...] = (y + b2_ref[...]).astype(o_ref.dtype)


def _mlp_kernel_hidden_tiled(x_ref, w1_ref, b1_ref, w2_ref, b2_ref, o_ref,
                             acc_ref):
    # Grid = (batch tiles, hidden chunks); hidden chunk axis is the reduction.
    c = pl.program_id(1)

    @pl.when(c == 0)
    def _():
        acc_ref[...] = jnp.zeros_like(acc_ref)

    h = jnp.dot(x_ref[...], w1_ref[...], preferred_element_type=jnp.float32)
    h = jnp.maximum(h + b1_ref[...], 0.0)
    acc_ref[...] += jnp.dot(h.astype(w2_ref.dtype), w2_ref[...],
                            preferred_element_type=jnp.float32)

    @pl.when(c == pl.num_programs(1) - 1)
    def _():
        o_ref[...] = (acc_ref[...] + b2_ref[...]).astype(o_ref.dtype)


# --------------------------------------------------------------------------
# One-time parameter preparation (hoisted out of the per-call forward)
# --------------------------------------------------------------------------
def prepare_params(w1, b1, w2, b2):
    """Pad feature dims to lane width (128), cast matmul operands to bf16.

    Weights are stored (in_features, out_features), i.e. transposed relative to
    PyTorch's nn.Linear.weight. Returns ((w1p, b1p, w2p, b2p), d_out)."""
    D_in, D_hid = w1.shape
    D_out = w2.shape[1]
    D_in_p = _round_up(D_in, LANE)
    D_hid_p = _round_up(D_hid, LANE)
    D_out_p = _round_up(D_out, LANE)
    w1p = jnp.pad(w1, ((0, D_in_p - D_in), (0, D_hid_p - D_hid))).astype(jnp.bfloat16)
    w2p = jnp.pad(w2, ((0, D_hid_p - D_hid), (0, D_out_p - D_out))).astype(jnp.bfloat16)
    b1p = jnp.pad(b1, (0, D_hid_p - D_hid)).astype(jnp.float32).reshape(1, D_hid_p)
    b2p = jnp.pad(b2, (0, D_out_p - D_out)).astype(jnp.float32).reshape(1, D_out_p)
    return (w1p, b1p, w2p, b2p), D_out


# --------------------------------------------------------------------------
# Forward
# --------------------------------------------------------------------------
@functools.partial(
    jax.jit,
    static_argnames=("d_out", "tile_b", "tile_h", "force_hidden_tiling",
                     "allow_xla_fallback"))
def one_layer_relu_forward(x, w1p, b1p, w2p, b2p, *, d_out,
                           tile_b=None, tile_h=None,
                           force_hidden_tiling=False,
                           allow_xla_fallback=True):
    """x: (B, D_in) unpadded; w1p/b1p/w2p/b2p from prepare_params()."""
    B, D_in = x.shape
    D_in_p, D_hid_p = w1p.shape
    D_out_p = w2p.shape[1]
    out_dtype = x.dtype
    out_itemsize = jnp.dtype(out_dtype).itemsize

    # --- tiny / sub-tile problems: Pallas cannot win, use plain XLA dots. ---
    if allow_xla_fallback and (B < 32 or max(D_in_p, D_hid_p, D_out_p) <= LANE):
        xb = x.astype(jnp.bfloat16)
        if D_in_p != D_in:
            xb = jnp.pad(xb, ((0, 0), (0, D_in_p - D_in)))
        h = jnp.maximum(
            jnp.dot(xb, w1p, preferred_element_type=jnp.float32) + b1p, 0.0)
        y = jnp.dot(h.astype(jnp.bfloat16), w2p,
                    preferred_element_type=jnp.float32) + b2p
        return y[:, :d_out].astype(out_dtype)

    vmem_budget, is_small_vmem = _tpu_config()

    # --- batch tiling -------------------------------------------------------
    Bp = _round_up(B, SUBLANE_BF16)
    if tile_b is None:
        tile_b = 256                      # amortize per-step overhead; 256-row
    TILE_B = min(_round_up(tile_b, SUBLANE_BF16), Bp)
    # v7x-like chips (2 TCs): keep >= 2 batch tiles so the "parallel" axis
    # actually shards across both TensorCores.
    if is_small_vmem and Bp >= 2 * SUBLANE_BF16:
        TILE_B = min(TILE_B, _round_up((Bp + 1) // 2, SUBLANE_BF16))
    Bp = _round_up(Bp, TILE_B)
    n_btiles = Bp // TILE_B

    # --- resident-weights feasibility (weights single-buffered) -------------
    resident_bytes = (
        2 * (D_in_p * D_hid_p + D_hid_p * D_out_p)      # bf16 weights, 1x buffer
        + 4 * (D_hid_p + D_out_p)                       # f32 biases
        + 2 * TILE_B * D_in_p * 2                       # x tile, double-buffered
        + 2 * TILE_B * D_out_p * out_itemsize           # out tile, double-buffered
        + TILE_B * D_hid_p * 4                          # f32 hidden intermediate
        + TILE_B * D_out_p * 4)                         # f32 output intermediate
    d_hid_cap = 1024 if is_small_vmem else 2048         # intermediate-h pressure
    use_resident = (not force_hidden_tiling
                    and resident_bytes <= (vmem_budget * 7) // 10
                    and D_hid_p <= d_hid_cap)

    # --- prepare x: pad only if actually needed, cast to bf16 ---------------
    # TODO(synk): with allow_input_fusion the cast could fuse into the kernel.
    xp = x
    if xp.dtype != jnp.bfloat16:
        xp = xp.astype(jnp.bfloat16)
    if (Bp, D_in_p) != (B, D_in):
        xp = jnp.pad(xp, ((0, Bp - B), (0, D_in_p - D_in)))

    flops = 2 * Bp * D_in_p * D_hid_p + 2 * Bp * D_hid_p * D_out_p

    if use_resident:
        bytes_accessed = (Bp * D_in_p * 2
                          + (D_in_p * D_hid_p + D_hid_p * D_out_p) * 2
                          + (D_hid_p + D_out_p) * 4
                          + Bp * D_out_p * out_itemsize)
        out_padded = pl.pallas_call(
            _mlp_kernel_resident,
            out_shape=jax.ShapeDtypeStruct((Bp, D_out_p), out_dtype),
            grid_spec=pltpu.PrefetchScalarGridSpec(
                num_scalar_prefetch=0,
                grid=(n_btiles,),
                in_specs=[
                    pl.BlockSpec((TILE_B, D_in_p), lambda i: (i, 0)),     # x tile
                    _resident_spec((D_in_p, D_hid_p), lambda i: (0, 0)),  # w1
                    _resident_spec((1, D_hid_p), lambda i: (0, 0)),       # b1
                    _resident_spec((D_hid_p, D_out_p), lambda i: (0, 0)), # w2
                    _resident_spec((1, D_out_p), lambda i: (0, 0)),       # b2
                ],
                out_specs=pl.BlockSpec((TILE_B, D_out_p), lambda i: (i, 0)),
            ),
            compiler_params=pltpu.CompilerParams(
                dimension_semantics=("parallel",),
                vmem_limit_bytes=vmem_budget),
            cost_estimate=pl.CostEstimate(
                flops=flops, transcendentals=0, bytes_accessed=bytes_accessed),
        )(xp, w1p, b1p, w2p, b2p)
    else:
        # ------ hidden-dim-chunked path (weights / h too big for residency) --
        if tile_h is None:
            tile_h = 128
            for cand in (2048, 1024, 512, 256, 128):
                if D_hid_p % cand != 0:
                    continue
                chunk_bytes = (
                    2 * (D_in_p * cand + cand * D_out_p) * 2   # dbl-buffered W chunks
                    + 2 * cand * 4 + D_out_p * 4               # bias chunks
                    + 2 * TILE_B * D_in_p * 2                  # x tile
                    + 2 * TILE_B * D_out_p * out_itemsize      # out tile
                    + TILE_B * D_out_p * 4                     # acc scratch
                    + TILE_B * cand * 4)                       # f32 hidden chunk
                if chunk_bytes <= (vmem_budget * 7) // 10:
                    tile_h = cand
                    break
        TILE_H = tile_h
        assert D_hid_p % TILE_H == 0, "tile_h must divide the padded hidden dim"
        n_hchunks = D_hid_p // TILE_H

        bytes_accessed = (Bp * D_in_p * 2
                          + n_btiles * (D_in_p * D_hid_p + D_hid_p * D_out_p) * 2
                          + (D_hid_p + D_out_p) * 4
                          + Bp * D_out_p * out_itemsize)
        out_padded = pl.pallas_call(
            _mlp_kernel_hidden_tiled,
            out_shape=jax.ShapeDtypeStruct((Bp, D_out_p), out_dtype),
            grid_spec=pltpu.PrefetchScalarGridSpec(
                num_scalar_prefetch=0,
                grid=(n_btiles, n_hchunks),
                in_specs=[
                    pl.BlockSpec((TILE_B, D_in_p), lambda i, c: (i, 0)),   # x tile
                    pl.BlockSpec((D_in_p, TILE_H), lambda i, c: (0, c)),   # w1 chunk
                    pl.BlockSpec((1, TILE_H), lambda i, c: (0, c)),        # b1 chunk
                    pl.BlockSpec((TILE_H, D_out_p), lambda i, c: (c, 0)),  # w2 chunk
                    _resident_spec((1, D_out_p), lambda i, c: (0, 0)),     # b2
                ],
                out_specs=pl.BlockSpec((TILE_B, D_out_p), lambda i, c: (i, 0)),
                scratch_shapes=[pltpu.VMEM((TILE_B, D_out_p), jnp.float32)],
            ),
            compiler_params=pltpu.CompilerParams(
                dimension_semantics=("parallel", "arbitrary"),
                vmem_limit_bytes=vmem_budget),
            cost_estimate=pl.CostEstimate(
                flops=flops, transcendentals=0, bytes_accessed=bytes_accessed),
        )(xp, w1p, b1p, w2p, b2p)

    if (B, d_out) != (Bp, D_out_p):
        out_padded = out_padded[:B, :d_out]
    return out_padded


def init_params(key, size_11, size_12, size_22):
    """Deterministic init mimicking nn.Linear's U(-1/sqrt(fan_in), 1/sqrt(fan_in))."""
    k1, k2, k3, k4 = jax.random.split(key, 4)
    bound1 = 1.0 / jnp.sqrt(size_11)
    bound2 = 1.0 / jnp.sqrt(size_12)
    # stored as (in_features, out_features) == transpose of PyTorch's weight
    w1 = jax.random.uniform(k1, (size_11, size_12), jnp.float32, -bound1, bound1)
    b1 = jax.random.uniform(k2, (size_12,), jnp.float32, -bound1, bound1)
    w2 = jax.random.uniform(k3, (size_12, size_22), jnp.float32, -bound2, bound2)
    b2 = jax.random.uniform(k4, (size_22,), jnp.float32, -bound2, bound2)
    return w1, b1, w2, b2


if __name__ == "__main__":
    key = jax.random.PRNGKey(0)
    kx, kp, kx2 = jax.random.split(key, 3)

    # Module args: size_11 (fc1 in), size_12 (fc1 out / fc2 in),
    # size_21 (unused by the module), size_22 (fc2 out).
    B, size_11, size_12, size_22 = 256, 128, 256, 128

    x = jax.random.normal(kx, (B, size_11), jnp.float32)
    w1, b1, w2, b2 = init_params(kp, size_11, size_12, size_22)
    (w1p, b1p, w2p, b2p), d_out = prepare_params(w1, b1, w2, b2)

    # Reference mirroring the kernel numerics: bf16 matmul operands, f32 accum.
    def ref_fn(x, w1, b1, w2, b2):
        xb = x.astype(jnp.bfloat16).astype(jnp.float32)
        w1b = w1.astype(jnp.bfloat16).astype(jnp.float32)
        w2b = w2.astype(jnp.bfloat16).astype(jnp.float32)
        h = jnp.maximum(xb @ w1b + b1, 0.0)
        return h.astype(jnp.bfloat16).astype(jnp.float32) @ w2b + b2

    ref = ref_fn(x, w1, b1, w2, b2)

    # 1) resident-weights Pallas path.
    out = one_layer_relu_forward(x, w1p, b1p, w2p, b2p, d_out=d_out,
                                 allow_xla_fallback=False)
    jax.block_until_ready(out)
    assert out.shape == (B, size_22)
    assert jnp.allclose(out, ref, atol=2e-3, rtol=2e-3), (
        float(jnp.max(jnp.abs(out - ref))))

    # 2) hidden-dim-chunked Pallas path (forced: 2 chunks of 128).
    out_t = one_layer_relu_forward(x, w1p, b1p, w2p, b2p, d_out=d_out,
                                   force_hidden_tiling=True, tile_h=128,
                                   allow_xla_fallback=False)
    jax.block_until_ready(out_t)
    assert jnp.allclose(out_t, ref, atol=2e-3, rtol=2e-3), (
        float(jnp.max(jnp.abs(out_t - ref))))

    # 3) sub-tile regime of the original module -> XLA fallback path.
    Bs, s11, s12, s22 = 8, 32, 64, 16
    xs = jax.random.normal(kx2, (Bs, s11), jnp.float32)
    ws1, bs1, ws2, bs2 = init_params(kp, s11, s12, s22)
    (ws1p, bs1p, ws2p, bs2p), ds_out = prepare_params(ws1, bs1, ws2, bs2)
    out_s = one_layer_relu_forward(xs, ws1p, bs1p, ws2p, bs2p, d_out=ds_out)
    jax.block_until_ready(out_s)
    ref_s = ref_fn(xs, ws1, bs1, ws2, bs2)
    assert out_s.shape == (Bs, s22)
    assert jnp.allclose(out_s, ref_s, atol=2e-3, rtol=2e-3)

    print("KERNEL_OK")
</pallas_src>

<mosaic_0001>
module attributes {stable_mosaic.version = 11 : i64} {
  func.func @_mlp_kernel_resident(%arg0: i32, %arg1: memref<256x128xbf16, #tpu.memory_space<vmem>>, %arg2: memref<128x256xbf16, #tpu.memory_space<vmem>>, %arg3: memref<1x256xf32, #tpu.memory_space<vmem>>, %arg4: memref<256x128xbf16, #tpu.memory_space<vmem>>, %arg5: memref<1x128xf32, #tpu.memory_space<vmem>>, %arg6: memref<256x128xf32, #tpu.memory_space<vmem>>) attributes {dimension_semantics = [#tpu.dimension_semantics<parallel>], iteration_bounds = array<i64: 1>, scalar_prefetch = 0 : i64, scratch_operands = 0 : i64, tpu.core_type = #tpu.core_type<tc>, window_params = [{transform_indices = @transform_0, window_bounds = array<i64: 256, 128>}, {pipeline_mode = #tpu.pipeline_mode<synchronous>, transform_indices = @transform_1, window_bounds = array<i64: 128, 256>}, {pipeline_mode = #tpu.pipeline_mode<synchronous>, transform_indices = @transform_2, window_bounds = array<i64: 1, 256>}, {pipeline_mode = #tpu.pipeline_mode<synchronous>, transform_indices = @transform_3, window_bounds = array<i64: 256, 128>}, {pipeline_mode = #tpu.pipeline_mode<synchronous>, transform_indices = @transform_4, window_bounds = array<i64: 1, 128>}, {transform_indices = @transform_5, window_bounds = array<i64: 256, 128>}]} {
    %c0 = arith.constant 0 : index
    %c0_0 = arith.constant 0 : index
    %0 = vector.load %arg1[%c0, %c0_0] : memref<256x128xbf16, #tpu.memory_space<vmem>>, vector<256x128xbf16>
    %c0_1 = arith.constant 0 : index
    %c0_2 = arith.constant 0 : index
    %1 = vector.load %arg2[%c0_1, %c0_2] : memref<128x256xbf16, #tpu.memory_space<vmem>>, vector<128x256xbf16>
    %cst = arith.constant dense<0.000000e+00> : vector<256x256xf32>
    %2 = tpu.matmul %0, %1, %cst {dimension_numbers = #tpu.dot_dimension_numbers<[1], [0], [0], [1], [0, 0, 1, 1], [], []>} : vector<256x128xbf16>, vector<128x256xbf16>, vector<256x256xf32> -> vector<256x256xf32>
    %c0_3 = arith.constant 0 : index
    %c0_4 = arith.constant 0 : index
    %3 = vector.load %arg3[%c0_3, %c0_4] : memref<1x256xf32, #tpu.memory_space<vmem>>, vector<1x256xf32>
    %4 = vector.broadcast %3 : vector<1x256xf32> to vector<256x256xf32>
    %5 = arith.addf %2, %4 : vector<256x256xf32>
    %cst_5 = arith.constant 0.000000e+00 : f32
    %6 = vector.broadcast %cst_5 : f32 to vector<256x256xf32>
    %7 = arith.maximumf %5, %6 : vector<256x256xf32>
    %8 = arith.truncf %7 : vector<256x256xf32> to vector<256x256xbf16>
    %c0_6 = arith.constant 0 : index
    %c0_7 = arith.constant 0 : index
    %9 = vector.load %arg4[%c0_6, %c0_7] : memref<256x128xbf16, #tpu.memory_space<vmem>>, vector<256x128xbf16>
    %cst_8 = arith.constant dense<0.000000e+00> : vector<256x128xf32>
    %10 = tpu.matmul %8, %9, %cst_8 {dimension_numbers = #tpu.dot_dimension_numbers<[1], [0], [0], [1], [0, 0, 1, 1], [], []>} : vector<256x256xbf16>, vector<256x128xbf16>, vector<256x128xf32> -> vector<256x128xf32>
    %c0_9 = arith.constant 0 : index
    %c0_10 = arith.constant 0 : index
    %11 = vector.load %arg5[%c0_9, %c0_10] : memref<1x128xf32, #tpu.memory_space<vmem>>, vector<1x128xf32>
    %12 = vector.broadcast %11 : vector<1x128xf32> to vector<256x128xf32>
    %13 = arith.addf %10, %12 : vector<256x128xf32>
    %c0_11 = arith.constant 0 : index
    %c0_12 = arith.constant 0 : index
    %14 = vector.load %arg6[%c0_11, %c0_12] : memref<256x128xf32, #tpu.memory_space<vmem>>, vector<256x128xf32>
    tpu.vector_store %arg6[%c0_11, %c0_12], %13 {strides = array<i32>} : memref<256x128xf32, #tpu.memory_space<vmem>>, vector<256x128xf32>,
    return
  }
  func.func @transform_0(%arg0: i32) -> (i32, i32) {
    %c0_i32 = arith.constant 0 : i32
    %c0_i32_0 = arith.constant 0 : i32
    return %arg0, %c0_i32 : i32, i32
  }
  func.func @transform_1(%arg0: i32) -> (i32, i32) {
    %c0_i32 = arith.constant 0 : i32
    %c0_i32_0 = arith.constant 0 : i32
    %c0_i32_1 = arith.constant 0 : i32
    return %c0_i32, %c0_i32_0 : i32, i32
  }
  func.func @transform_2(%arg0: i32) -> (i32, i32) {
    %c0_i32 = arith.constant 0 : i32
    %c0_i32_0 = arith.constant 0 : i32
    %c0_i32_1 = arith.constant 0 : i32
    return %c0_i32, %c0_i32_0 : i32, i32
  }
  func.func @transform_3(%arg0: i32) -> (i32, i32) {
    %c0_i32 = arith.constant 0 : i32
    %c0_i32_0 = arith.constant 0 : i32
    %c0_i32_1 = arith.constant 0 : i32
    return %c0_i32, %c0_i32_0 : i32, i32
  }
  func.func @transform_4(%arg0: i32) -> (i32, i32) {
    %c0_i32 = arith.constant 0 : i32
    %c0_i32_0 = arith.constant 0 : i32
    %c0_i32_1 = arith.constant 0 : i32
    return %c0_i32, %c0_i32_0 : i32, i32
  }
  func.func @transform_5(%arg0: i32) -> (i32, i32) {
    %c0_i32 = arith.constant 0 : i32
    %c0_i32_0 = arith.constant 0 : i32
    return %arg0, %c0_i32 : i32, i32
  }
}

</mosaic_0001>

<llo_original>
// kernel: one_layer_relu_forward.1
$region0: #{one_layer_relu_forward.1}
  #allocation0 [shape = 'u32[]', space=smem, size = 0x4, offset = 0x4, fixed_abs, tag = 'smem constant byte address 0x4 - core index']
  #allocation1 [shape = 'u32[144,128]{1,0:T(1,128)}', space=vmem, size = 0x12000, scoped, tag = 'internal scratch']
  %s0 = inlined_call_operand.hbm [shape: bf16[256,128], index: 0, kind: input, shape index: {}]
  %s1 = inlined_call_operand.hbm [shape: bf16[128,256], index: 1, kind: input, shape index: {}]
  %s2 = inlined_call_operand.hbm [shape: f32[1,256], index: 2, kind: input, shape index: {}]
  %s3 = inlined_call_operand.hbm [shape: bf16[256,128], index: 3, kind: input, shape index: {}]
  %s4 = inlined_call_operand.hbm [shape: f32[1,128], index: 4, kind: input, shape index: {}]
  %s5 = inlined_call_operand.hbm [shape: f32[256,128], index: 5, kind: output, shape index: {}]
  %s6 = sld [smem:[#allocation0]]
  $region50: #{one_layer_relu_forward.1} parent=0
    _
  %s8 = ssub.s32 1, %s6
  %s9 = scalar_select 0, %s8, %s6
  $region1: #{one_layer_relu_forward.1} parent=0
    #allocation2 [shape = 'u8[65536]{0}', space=vmem, size = 0x10000, scoped, tag = 'input window, operand 0, single buffered']
    #allocation3 [shape = 's32[1]{0}', space=sflag, size = 0x4, scoped, tag = 'scoped memory for one_layer_relu_forward.1']
    #allocation4 [shape = 's32[1]{0}', space=sflag, size = 0x4, scoped, tag = 'scoped memory for one_layer_relu_forward.1']
    #allocation5 [shape = 'u8[65536]{0}', space=vmem, size = 0x10000, scoped, tag = 'input window, operand 1, single buffered']
    #allocation6 [shape = 's32[1]{0}', space=sflag, size = 0x4, scoped, tag = 'scoped memory for one_layer_relu_forward.1']
    #allocation7 [shape = 'u8[1024]{0}', space=vmem, size = 0x400, scoped, tag = 'input window, operand 2, single buffered']
    #allocation8 [shape = 'u8[65536]{0}', space=vmem, size = 0x10000, scoped, tag = 'input window, operand 3, single buffered']
    #allocation9 [shape = 's32[1]{0}', space=sflag, size = 0x4, scoped, tag = 'scoped memory for one_layer_relu_forward.1']
    #allocation10 [shape = 'u8[512]{0}', space=vmem, size = 0x400, scoped, tag = 'input window, operand 4, single buffered']
    #allocation11 [shape = 'u8[131072]{0}', space=vmem, size = 0x20000, scoped, tag = 'output window, operand 0, single buffered']
    %10 = vsyncpa [#allocation3], 0
    %11 = vsyncpa [#allocation6], 0
    %12 = vsyncpa [#allocation9], 0
    %13 = vsyncpa [#allocation4], 0
    // Predicated region
    $region2: #{one_layer_relu_forward.1} parent=1 // pred_check
      _
    $region3: #{one_layer_relu_forward.1} parent=1 // pred_check_branch
      %15 = sbr.rel (0) target = $region5
    $region4: #{one_layer_relu_forward.1} parent=1 // pred_region
      %s17 = ssub.s32 2048, 2048
      %18 = vsyncadd [#allocation3], %s17
      %s19 = sshll.u32 [#allocation2], 4
      %s20 = int_to_ptr.vmem [resolvable:$true] %s19
      %25 = dma.hbm_to_vmem [thread:$0]  %s0, 2048, %s20, [#allocation3], 64, 64, 4
    $region5: #{one_layer_relu_forward.1} parent=1 // pred_fallthru
      _
    // Predicated region
    $region6: #{one_layer_relu_forward.1} parent=1 // pred_check
      _
    $region7: #{one_layer_relu_forward.1} parent=1 // pred_check_branch
      %27 = sbr.rel (0) target = $region9
    $region8: #{one_layer_relu_forward.1} parent=1 // pred_region
      %s29 = ssub.s32 2048, 2048
      %30 = vsyncadd [#allocation6], %s29
      %s31 = sshll.u32 [#allocation5], 4
      %s32 = int_to_ptr.vmem [resolvable:$true] %s31
      %37 = dma.hbm_to_vmem [thread:$0]  %s1, 2048, %s32, [#allocation6], 128, 128, 8
    $region9: #{one_layer_relu_forward.1} parent=1 // pred_fallthru
      _
    // Predicated region
    $region10: #{one_layer_relu_forward.1} parent=1 // pred_check
      _
    $region11: #{one_layer_relu_forward.1} parent=1 // pred_check_branch
      %39 = sbr.rel (0) target = $region13
    $region12: #{one_layer_relu_forward.1} parent=1 // pred_region
      %s41 = ssub.s32 32, 32
      %42 = vsyncadd [#allocation6], %s41
      %s44 = sshll.u32 [#allocation7], 4
      %s45 = int_to_ptr.vmem [resolvable:$true] %s44
      %47 = dma.hbm_to_vmem [thread:$0]  %s2, 32, %s45, [#allocation6]
    $region13: #{one_layer_relu_forward.1} parent=1 // pred_fallthru
      _
    // Predicated region
    $region14: #{one_layer_relu_forward.1} parent=1 // pred_check
      _
    $region15: #{one_layer_relu_forward.1} parent=1 // pred_check_branch
      %49 = sbr.rel (0) target = $region17
    $region16: #{one_layer_relu_forward.1} parent=1 // pred_region
      %s51 = ssub.s32 2048, 2048
      %52 = vsyncadd [#allocation9], %s51
      %s53 = sshll.u32 [#allocation8], 4
      %s54 = int_to_ptr.vmem [resolvable:$true] %s53
      %59 = dma.hbm_to_vmem [thread:$0]  %s3, 2048, %s54, [#allocation9], 64, 64, 4
    $region17: #{one_layer_relu_forward.1} parent=1 // pred_fallthru
      _
    // Predicated region
    $region18: #{one_layer_relu_forward.1} parent=1 // pred_check
      _
    $region19: #{one_layer_relu_forward.1} parent=1 // pred_check_branch
      %61 = sbr.rel (0) target = $region21
    $region20: #{one_layer_relu_forward.1} parent=1 // pred_region
      %s63 = ssub.s32 16, 16
      %64 = vsyncadd [#allocation9], %s63
      %s66 = sshll.u32 [#allocation10], 4
      %s67 = int_to_ptr.vmem [resolvable:$true] %s66
      %69 = dma.hbm_to_vmem [thread:$0]  %s4, 16, %s67, [#allocation9]
    $region21: #{one_layer_relu_forward.1} parent=1 // pred_fallthru
      _
    // Predicated region
    $region22: #{one_layer_relu_forward.1} parent=1 // pred_check
      _
    $region23: #{one_layer_relu_forward.1} parent=1 // pred_check_branch
      %71 = sbr.rel (0) target = $region25
    $region24: #{one_layer_relu_forward.1} parent=1 // pred_region
      %72 = dma.done [#allocation3], 2048
    $region25: #{one_layer_relu_forward.1} parent=1 // pred_fallthru
      _
    // Predicated region
    $region26: #{one_layer_relu_forward.1} parent=1 // pred_check
      _
    $region27: #{one_layer_relu_forward.1} parent=1 // pred_check_branch
      %74 = sbr.rel (0) target = $region29
    $region28: #{one_layer_relu_forward.1} parent=1 // pred_region
      %75 = dma.done [#allocation6], 2048
    $region29: #{one_layer_relu_forward.1} parent=1 // pred_fallthru
      _
    // Predicated region
    $region30: #{one_layer_relu_forward.1} parent=1 // pred_check
      _
    $region31: #{one_layer_relu_forward.1} parent=1 // pred_check_branch
      %77 = sbr.rel (0) target = $region33
    $region32: #{one_layer_relu_forward.1} parent=1 // pred_region
      %78 = dma.done [#allocation6], 32
    $region33: #{one_layer_relu_forward.1} parent=1 // pred_fallthru
      _
    // Predicated region
    $region34: #{one_layer_relu_forward.1} parent=1 // pred_check
      _
    $region35: #{one_layer_relu_forward.1} parent=1 // pred_check_branch
      %80 = sbr.rel (0) target = $region37
    $region36: #{one_layer_relu_forward.1} parent=1 // pred_region
      %81 = dma.done [#allocation9], 2048
    $region37: #{one_layer_relu_forward.1} parent=1 // pred_fallthru
      _
    // Predicated region
    $region38: #{one_layer_relu_forward.1} parent=1 // pred_check
      _
    $region39: #{one_layer_relu_forward.1} parent=1 // pred_check_branch
      %83 = sbr.rel (0) target = $region41
    $region40: #{one_layer_relu_forward.1} parent=1 // pred_region
      %84 = dma.done [#allocation9], 16
    $region41: #{one_layer_relu_forward.1} parent=1 // pred_fallthru
      _
    %v86 = vld [vmem:[#allocation2] sm:$0xf]
    %v87 = vld [vmem:[#allocation2 + $0x4] sm:$0xf]
    %v88 = vld [vmem:[#allocation2 + $0x8] sm:$0xf]
    %v89 = vld [vmem:[#allocation2 + $0xc] sm:$0xf]
    %v90 = vld [vmem:[#allocation2 + $0x10] sm:$0xf]
    %v91 = vld [vmem:[#allocation2 + $0x14] sm:$0xf]
    %v92 = vld [vmem:[#allocation2 + $0x18] sm:$0xf]
    %v93 = vld [vmem:[#allocation2 + $0x1c] sm:$0xf]
    %v94 = vld [vmem:[#allocation2 + $0x20] sm:$0xf]
    %v95 = vld [vmem:[#allocation2 + $0x24] sm:$0xf]
    %v96 = vld [vmem:[#allocation2 + $0x28] sm:$0xf]
    %v97 = vld [vmem:[#allocation2 + $0x2c] sm:$0xf]
    %v98 = vld [vmem:[#allocation2 + $0x30] sm:$0xf]
    %v99 = vld [vmem:[#allocation2 + $0x34] sm:$0xf]
    %v100 = vld [vmem:[#allocation2 + $0x38] sm:$0xf]
    %v101 = vld [vmem:[#allocation2 + $0x3c] sm:$0xf]
    %v102 = vld [vmem:[#allocation2 + $0x40] sm:$0xf]
    %v103 = vld [vmem:[#allocation2 + $0x44] sm:$0xf]
    %v104 = vld [vmem:[#allocation2 + $0x48] sm:$0xf]
    %v105 = vld [vmem:[#allocation2 + $0x4c] sm:$0xf]
    %v106 = vld [vmem:[#allocation2 + $0x50] sm:$0xf]
    %v107 = vld [vmem:[#allocation2 + $0x54] sm:$0xf]
    %v108 = vld [vmem:[#allocation2 + $0x58] sm:$0xf]
    %v109 = vld [vmem:[#allocation2 + $0x5c] sm:$0xf]
    %v110 = vld [vmem:[#allocation2 + $0x60] sm:$0xf]
    %v111 = vld [vmem:[#allocation2 + $0x64] sm:$0xf]
    %v112 = vld [vmem:[#allocation2 + $0x68] sm:$0xf]
    %v113 = vld [vmem:[#allocation2 + $0x6c] sm:$0xf]
    %v114 = vld [vmem:[#allocation2 + $0x70] sm:$0xf]
    %v115 = vld [vmem:[#allocation2 + $0x74] sm:$0xf]
    %v116 = vld [vmem:[#allocation2 + $0x78] sm:$0xf]
    %v117 = vld [vmem:[#allocation2 + $0x7c] sm:$0xf]
    %v118 = vld [vmem:[#allocation5] sm:$0xff]
    %v119 = vld [vmem:[#allocation5 + $0x8] sm:$0xff]
    %v120 = vld [vmem:[#allocation5 + $0x10] sm:$0xff]
    %v121 = vld [vmem:[#allocation5 + $0x18] sm:$0xff]
    %v122 = vld [vmem:[#allocation5 + $0x20] sm:$0xff]
    %v123 = vld [vmem:[#allocation5 + $0x28] sm:$0xff]
    %v124 = vld [vmem:[#allocation5 + $0x30] sm:$0xff]
    %v125 = vld [vmem:[#allocation5 + $0x38] sm:$0xff]
    %v126 = vld [vmem:[#allocation5 + $0x40] sm:$0xff]
    %v127 = vld [vmem:[#allocation5 + $0x48] sm:$0xff]
    %v128 = vld [vmem:[#allocation5 + $0x50] sm:$0xff]
    %v129 = vld [vmem:[#allocation5 + $0x58] sm:$0xff]
    %v130 = vld [vmem:[#allocation5 + $0x60] sm:$0xff]
    %v131 = vld [vmem:[#allocation5 + $0x68] sm:$0xff]
    %v132 = vld [vmem:[#allocation5 + $0x70] sm:$0xff]
    %v133 = vld [vmem:[#allocation5 + $0x78] sm:$0xff]
    %v134 = vld [vmem:[#allocation7] sm:$0x3]
    %v136 = vlaneseq
    %v137 = vshrl.u32 %v136, 7
    %v138 = vsub.s32 0, %v137
    %v139 = vrot.slane %v134, %v138
    %v140 = vlaneseq
    %v141 = vshrl.u32 %v140, 7
    %v142 = vsub.s32 1, %v141
    %v143 = vrot.slane %v134, %v142
    %v178 = vunpack.c.l.b16 %v86
    %v179 = vunpack.c.l.b16 %v87
    %v180 = vunpack.c.l.b16 %v88
    %v181 = vunpack.c.l.b16 %v89
    %v182 = vunpack.c.l.b16 %v90
    %v183 = vunpack.c.l.b16 %v91
    %v184 = vunpack.c.l.b16 %v92
    %v185 = vunpack.c.l.b16 %v93
    %v186 = vunpack.c.l.b16 %v94
    %v187 = vunpack.c.l.b16 %v95
    %v188 = vunpack.c.l.b16 %v96
    %v189 = vunpack.c.l.b16 %v97
    %v190 = vunpack.c.l.b16 %v98
    %v191 = vunpack.c.l.b16 %v99
    %v192 = vunpack.c.l.b16 %v100
    %v193 = vunpack.c.l.b16 %v101
    %v194 = vunpack.c.l.b16 %v102
    %v195 = vunpack.c.l.b16 %v103
    %v196 = vunpack.c.l.b16 %v104
    %v197 = vunpack.c.l.b16 %v105
    %v198 = vunpack.c.l.b16 %v106
    %v199 = vunpack.c.l.b16 %v107
    %v200 = vunpack.c.l.b16 %v108
    %v201 = vunpack.c.l.b16 %v109
    %v202 = vunpack.c.l.b16 %v110
    %v203 = vunpack.c.l.b16 %v111
    %v204 = vunpack.c.l.b16 %v112
    %v205 = vunpack.c.l.b16 %v113
    %v206 = vunpack.c.l.b16 %v114
    %v207 = vunpack.c.l.b16 %v115
    %v208 = vunpack.c.l.b16 %v116
    %v209 = vunpack.c.l.b16 %v117
    %v210 = vpack.c.b16 %v179, %v178
    %v211 = vpack.c.b16 %v181, %v180
    %v212 = vpack.c.b16 %v183, %v182
    %v213 = vpack.c.b16 %v185, %v184
    %v214 = vpack.c.b16 %v187, %v186
    %v215 = vpack.c.b16 %v189, %v188
    %v216 = vpack.c.b16 %v191, %v190
    %v217 = vpack.c.b16 %v193, %v192
    %v218 = vpack.c.b16 %v195, %v194
    %v219 = vpack.c.b16 %v197, %v196
    %v220 = vpack.c.b16 %v199, %v198
    %v221 = vpack.c.b16 %v201, %v200
    %v222 = vpack.c.b16 %v203, %v202
    %v223 = vpack.c.b16 %v205, %v204
    %v224 = vpack.c.b16 %v207, %v206
    %v225 = vpack.c.b16 %v209, %v208
    %v258 = vunpack.c.l.b16 %v118
    %v259 = vunpack.c.h.b16 %v118
    %v260 = vunpack.c.l.b16 %v119
    %v261 = vunpack.c.h.b16 %v119
    %v262 = vunpack.c.l.b16 %v120
    %v263 = vunpack.c.h.b16 %v120
    %v264 = vunpack.c.l.b16 %v121
    %v265 = vunpack.c.h.b16 %v121
    %v266 = vunpack.c.l.b16 %v122
    %v267 = vunpack.c.h.b16 %v122
    %v268 = vunpack.c.l.b16 %v123
    %v269 = vunpack.c.h.b16 %v123
    %v270 = vunpack.c.l.b16 %v124
    %v271 = vunpack.c.h.b16 %v124
    %v272 = vunpack.c.l.b16 %v125
    %v273 = vunpack.c.h.b16 %v125
    %v274 = vunpack.c.l.b16 %v126
    %v275 = vunpack.c.h.b16 %v126
    %v276 = vunpack.c.l.b16 %v127
    %v277 = vunpack.c.h.b16 %v127
    %v278 = vunpack.c.l.b16 %v128
    %v279 = vunpack.c.h.b16 %v128
    %v280 = vunpack.c.l.b16 %v129
    %v281 = vunpack.c.h.b16 %v129
    %v282 = vunpack.c.l.b16 %v130
    %v283 = vunpack.c.h.b16 %v130
    %v284 = vunpack.c.l.b16 %v131
    %v285 = vunpack.c.h.b16 %v131
    %v286 = vunpack.c.l.b16 %v132
    %v287 = vunpack.c.h.b16 %v132
    %v288 = vunpack.c.l.b16 %v133
    %v289 = vunpack.c.h.b16 %v133
    %v290 = vpack.c.b16 %v260, %v258
    %v291 = vpack.c.b16 %v261, %v259
    %v292 = vpack.c.b16 %v264, %v262
    %v293 = vpack.c.b16 %v265, %v263
    %v294 = vpack.c.b16 %v268, %v266
    %v295 = vpack.c.b16 %v269, %v267
    %v296 = vpack.c.b16 %v272, %v270
    %v297 = vpack.c.b16 %v273, %v271
    %v298 = vpack.c.b16 %v276, %v274
    %v299 = vpack.c.b16 %v277, %v275
    %v300 = vpack.c.b16 %v280, %v278
    %v301 = vpack.c.b16 %v281, %v279
    %v302 = vpack.c.b16 %v284, %v282
    %v303 = vpack.c.b16 %v285, %v283
    %v304 = vpack.c.b16 %v288, %v286
    %v305 = vpack.c.b16 %v289, %v287
    %322 = vmatprep.subr.bf16.mxu0 %v291
    %323 = vmatpush1.bf16.msra.mxu0 %v290
    %324 = vmatprep.subr.bf16.mxu0 %v293
    %325 = vmatpush1.bf16.msra.mxu0 %v292
    %326 = vmatprep.subr.bf16.mxu0 %v295
    %327 = vmatpush1.bf16.msra.mxu0 %v294
    %328 = vmatprep.subr.bf16.mxu0 %v297
    %329 = vmatpush1.bf16.msra.mxu0 %v296
    %330 = vmatprep.subr.bf16.mxu0 %v299
    %331 = vmatpush1.bf16.msra.mxu0 %v298
    %332 = vmatprep.subr.bf16.mxu0 %v301
    %333 = vmatpush1.bf16.msra.mxu0 %v300
    %334 = vmatprep.subr.bf16.mxu0 %v303
    %335 = vmatpush1.bf16.msra.mxu0 %v302
    %336 = vmatprep.subr.bf16.mxu0 %v305
    %337 = vmatpush1.bf16.msra.mxu0 %v304
    %338 = vmatprep.subr.bf16.mxu0 0
    %339 = vmatpush1.bf16.msra.mxu0 0
    %340 = vmatprep.subr.bf16.mxu0 0
    %341 = vmatpush1.bf16.msra.mxu0 0
    %342 = vmatprep.subr.bf16.mxu0 0
    %343 = vmatpush1.bf16.msra.mxu0 0
    %344 = vmatprep.subr.bf16.mxu0 0
    %345 = vmatpush1.bf16.msra.mxu0 0
    %346 = vmatprep.subr.bf16.mxu0 0
    %347 = vmatpush1.bf16.msra.mxu0 0
    %348 = vmatprep.subr.bf16.mxu0 0
    %349 = vmatpush1.bf16.msra.mxu0 0
    %350 = vmatprep.subr.bf16.mxu0 0
    %351 = vmatpush1.bf16.msra.mxu0 0
    %352 = vmatprep.subr.bf16.mxu0 0
    %353 = vmatpush1.bf16.msra.mxu0 0
    %354 = vmatprep.mubr.bf16.mxu0 0
    %355 = vmatmul.mubr.bf16.gmra.mrb[0].mxu0 %v210
    %v356 = vpop.f32.mrb[0].mxu0
    %v357 = vadd.f32 %v139, %v356
    %v358 = vpop.f32.mrb[0].mxu0
    %v359 = vadd.f32 %v143, %v358
    %v360 = vpop.f32.mrb[0].mxu0
    %v361 = vadd.f32 %v139, %v360
    %v362 = vpop.f32.mrb[0].mxu0
    %v363 = vadd.f32 %v143, %v362
    %364 = vmatprep.mubr.bf16.mxu0 0
    %365 = vmatmul.mubr.bf16.gmra.mrb[0].mxu0 %v211
    %v366 = vpop.f32.mrb[0].mxu0
    %v367 = vadd.f32 %v139, %v366
    %v368 = vpop.f32.mrb[0].mxu0
    %v369 = vadd.f32 %v143, %v368
    %v370 = vpop.f32.mrb[0].mxu0
    %v371 = vadd.f32 %v139, %v370
    %v372 = vpop.f32.mrb[0].mxu0
    %v373 = vadd.f32 %v143, %v372
    %374 = vmatprep.mubr.bf16.mxu0 0
    %375 = vmatmul.mubr.bf16.gmra.mrb[0].mxu0 %v212
    %v376 = vpop.f32.mrb[0].mxu0
    %v377 = vadd.f32 %v139, %v376
    %v378 = vpop.f32.mrb[0].mxu0
    %v379 = vadd.f32 %v143, %v378
    %v380 = vpop.f32.mrb[0].mxu0
    %v381 = vadd.f32 %v139, %v380
    %v382 = vpop.f32.mrb[0].mxu0
    %v383 = vadd.f32 %v143, %v382
    %384 = vmatprep.mubr.bf16.mxu0 0
    %385 = vmatmul.mubr.bf16.gmra.mrb[0].mxu0 %v213
    %v386 = vpop.f32.mrb[0].mxu0
    %v387 = vadd.f32 %v139, %v386
    %v388 = vpop.f32.mrb[0].mxu0
    %v389 = vadd.f32 %v143, %v388
    %v390 = vpop.f32.mrb[0].mxu0
    %v391 = vadd.f32 %v139, %v390
    %v392 = vpop.f32.mrb[0].mxu0
    %v393 = vadd.f32 %v143, %v392
    %394 = vmatprep.mubr.bf16.mxu0 0
    %395 = vmatmul.mubr.bf16.gmra.mrb[0].mxu0 %v214
    %v396 = vpop.f32.mrb[0].mxu0
    %v397 = vadd.f32 %v139, %v396
    %v398 = vpop.f32.mrb[0].mxu0
    %v399 = vadd.f32 %v143, %v398
    %v400 = vpop.f32.mrb[0].mxu0
    %v401 = vadd.f32 %v139, %v400
    %v402 = vpop.f32.mrb[0].mxu0
    %v403 = vadd.f32 %v143, %v402
    %404 = vmatprep.mubr.bf16.mxu0 0
    %405 = vmatmul.mubr.bf16.gmra.mrb[0].mxu0 %v215
    %v406 = vpop.f32.mrb[0].mxu0
    %v407 = vadd.f32 %v139, %v406
    %v408 = vpop.f32.mrb[0].mxu0
    %v409 = vadd.f32 %v143, %v408
    %v410 = vpop.f32.mrb[0].mxu0
    %v411 = vadd.f32 %v139, %v410
    %v412 = vpop.f32.mrb[0].mxu0
    %v413 = vadd.f32 %v143, %v412
    %414 = vmatprep.mubr.bf16.mxu0 0
    %415 = vmatmul.mubr.bf16.gmra.mrb[0].mxu0 %v216
    %v416 = vpop.f32.mrb[0].mxu0
    %v417 = vadd.f32 %v139, %v416
    %v418 = vpop.f32.mrb[0].mxu0
    %v419 = vadd.f32 %v143, %v418
    %v420 = vpop.f32.mrb[0].mxu0
    %v421 = vadd.f32 %v139, %v420
    %v422 = vpop.f32.mrb[0].mxu0
    %v423 = vadd.f32 %v143, %v422
    %424 = vmatprep.mubr.bf16.mxu0 0
    %425 = vmatmul.mubr.bf16.gmra.mrb[0].mxu0 %v217
    %v426 = vpop.f32.mrb[0].mxu0
    %v427 = vadd.f32 %v139, %v426
    %v428 = vpop.f32.mrb[0].mxu0
    %v429 = vadd.f32 %v143, %v428
    %v430 = vpop.f32.mrb[0].mxu0
    %v431 = vadd.f32 %v139, %v430
    %v432 = vpop.f32.mrb[0].mxu0
    %v433 = vadd.f32 %v143, %v432
    %434 = vmatprep.mubr.bf16.mxu0 0
    %435 = vmatmul.mubr.bf16.gmra.mrb[0].mxu0 %v218
    %v436 = vpop.f32.mrb[0].mxu0
    %v437 = vadd.f32 %v139, %v436
    %v438 = vpop.f32.mrb[0].mxu0
    %v439 = vadd.f32 %v143, %v438
    %v440 = vpop.f32.mrb[0].mxu0
    %v441 = vadd.f32 %v139, %v440
    %v442 = vpop.f32.mrb[0].mxu0
    %v443 = vadd.f32 %v143, %v442
    %444 = vmatprep.mubr.bf16.mxu0 0
    %445 = vmatmul.mubr.bf16.gmra.mrb[0].mxu0 %v219
    %v446 = vpop.f32.mrb[0].mxu0
    %v447 = vadd.f32 %v139, %v446
    %v448 = vpop.f32.mrb[0].mxu0
    %v449 = vadd.f32 %v143, %v448
    %v450 = vpop.f32.mrb[0].mxu0
    %v451 = vadd.f32 %v139, %v450
    %v452 = vpop.f32.mrb[0].mxu0
    %v453 = vadd.f32 %v143, %v452
    %454 = vmatprep.mubr.bf16.mxu0 0
    %455 = vmatmul.mubr.bf16.gmra.mrb[0].mxu0 %v220
    %v456 = vpop.f32.mrb[0].mxu0
    %v457 = vadd.f32 %v139, %v456
    %v458 = vpop.f32.mrb[0].mxu0
    %v459 = vadd.f32 %v143, %v458
    %v460 = vpop.f32.mrb[0].mxu0
    %v461 = vadd.f32 %v139, %v460
    %v462 = vpop.f32.mrb[0].mxu0
    %v463 = vadd.f32 %v143, %v462
    %464 = vmatprep.mubr.bf16.mxu0 0
    %465 = vmatmul.mubr.bf16.gmra.mrb[0].mxu0 %v221
    %v466 = vpop.f32.mrb[0].mxu0
    %v467 = vadd.f32 %v139, %v466
    %v468 = vpop.f32.mrb[0].mxu0
    %v469 = vadd.f32 %v143, %v468
    %v470 = vpop.f32.mrb[0].mxu0
    %v471 = vadd.f32 %v139, %v470
    %v472 = vpop.f32.mrb[0].mxu0
    %v473 = vadd.f32 %v143, %v472
    %474 = vmatprep.mubr.bf16.mxu0 0
    %475 = vmatmul.mubr.bf16.gmra.mrb[0].mxu0 %v222
    %v476 = vpop.f32.mrb[0].mxu0
    %v477 = vadd.f32 %v139, %v476
    %v478 = vpop.f32.mrb[0].mxu0
    %v479 = vadd.f32 %v143, %v478
    %v480 = vpop.f32.mrb[0].mxu0
    %v481 = vadd.f32 %v139, %v480
    %v482 = vpop.f32.mrb[0].mxu0
    %v483 = vadd.f32 %v143, %v482
    %484 = vmatprep.mubr.bf16.mxu0 0
    %485 = vmatmul.mubr.bf16.gmra.mrb[0].mxu0 %v223
    %v486 = vpop.f32.mrb[0].mxu0
    %v487 = vadd.f32 %v139, %v486
    %v488 = vpop.f32.mrb[0].mxu0
    %v489 = vadd.f32 %v143, %v488
    %v490 = vpop.f32.mrb[0].mxu0
    %v491 = vadd.f32 %v139, %v490
    %v492 = vpop.f32.mrb[0].mxu0
    %v493 = vadd.f32 %v143, %v492
    %494 = vmatprep.mubr.bf16.mxu0 0
    %495 = vmatmul.mubr.bf16.gmra.mrb[0].mxu0 %v224
    %v496 = vpop.f32.mrb[0].mxu0
    %v497 = vadd.f32 %v139, %v496
    %v498 = vpop.f32.mrb[0].mxu0
    %v499 = vadd.f32 %v143, %v498
    %v500 = vpop.f32.mrb[0].mxu0
    %v501 = vadd.f32 %v139, %v500
    %v502 = vpop.f32.mrb[0].mxu0
    %v503 = vadd.f32 %v143, %v502
    %504 = vmatprep.mubr.bf16.mxu0 0
    %505 = vmatmul.mubr.bf16.gmra.mrb[0].mxu0 %v225
    %v506 = vpop.f32.mrb[0].mxu0
    %v507 = vadd.f32 %v139, %v506
    %v508 = vpop.f32.mrb[0].mxu0
    %v509 = vadd.f32 %v143, %v508
    %v510 = vpop.f32.mrb[0].mxu0
    %v511 = vadd.f32 %v139, %v510
    %v512 = vpop.f32.mrb[0].mxu0
    %v513 = vadd.f32 %v143, %v512
    %514 = vdwg.mxu0
    %v515 = vmax.f32 %v357, 0.0
    %v516 = vmax.f32 %v359, 0.0
    %v517 = vmax.f32 %v361, 0.0
    %v518 = vmax.f32 %v363, 0.0
    %v519 = vmax.f32 %v367, 0.0
    %v520 = vmax.f32 %v369, 0.0
    %v521 = vmax.f32 %v371, 0.0
    %v522 = vmax.f32 %v373, 0.0
    %v523 = vmax.f32 %v377, 0.0
    %v524 = vmax.f32 %v379, 0.0
    %v525 = vmax.f32 %v381, 0.0
    %v526 = vmax.f32 %v383, 0.0
    %v527 = vmax.f32 %v387, 0.0
    %v528 = vmax.f32 %v389, 0.0
    %v529 = vmax.f32 %v391, 0.0
    %v530 = vmax.f32 %v393, 0.0
    %v531 = vmax.f32 %v397, 0.0
    %v532 = vmax.f32 %v399, 0.0
    %v533 = vmax.f32 %v401, 0.0
    %v534 = vmax.f32 %v403, 0.0
    %v535 = vmax.f32 %v407, 0.0
    %v536 = vmax.f32 %v409, 0.0
    %v537 = vmax.f32 %v411, 0.0
    %v538 = vmax.f32 %v413, 0.0
    %v539 = vmax.f32 %v417, 0.0
    %v540 = vmax.f32 %v419, 0.0
    %v541 = vmax.f32 %v421, 0.0
    %v542 = vmax.f32 %v423, 0.0
    %v543 = vmax.f32 %v427, 0.0
    %v544 = vmax.f32 %v429, 0.0
    %v545 = vmax.f32 %v431, 0.0
    %v546 = vmax.f32 %v433, 0.0
    %v547 = vmax.f32 %v437, 0.0
    %v548 = vmax.f32 %v439, 0.0
    %v549 = vmax.f32 %v441, 0.0
    %v550 = vmax.f32 %v443, 0.0
    %v551 = vmax.f32 %v447, 0.0
    %v552 = vmax.f32 %v449, 0.0
    %v553 = vmax.f32 %v451, 0.0
    %v554 = vmax.f32 %v453, 0.0
    %v555 = vmax.f32 %v457, 0.0
    %v556 = vmax.f32 %v459, 0.0
    %v557 = vmax.f32 %v461, 0.0
    %v558 = vmax.f32 %v463, 0.0
    %v559 = vmax.f32 %v467, 0.0
    %v560 = vmax.f32 %v469, 0.0
    %v561 = vmax.f32 %v471, 0.0
    %v562 = vmax.f32 %v473, 0.0
    %v563 = vmax.f32 %v477, 0.0
    %v564 = vmax.f32 %v479, 0.0
    %v565 = vmax.f32 %v481, 0.0
    %v566 = vmax.f32 %v483, 0.0
    %v567 = vmax.f32 %v487, 0.0
    %v568 = vmax.f32 %v489, 0.0
    %v569 = vmax.f32 %v491, 0.0
    %v570 = vmax.f32 %v493, 0.0
    %v571 = vmax.f32 %v497, 0.0
    %v572 = vmax.f32 %v499, 0.0
    %v573 = vmax.f32 %v501, 0.0
    %v574 = vmax.f32 %v503, 0.0
    %v575 = vmax.f32 %v507, 0.0
    %v576 = vmax.f32 %v509, 0.0
    %v577 = vmax.f32 %v511, 0.0
    %v578 = vmax.f32 %v513, 0.0
    %v579 = vpack.c.bf16 %v517, %v515
    %v580 = vpack.c.bf16 %v518, %v516
    %v581 = vpack.c.bf16 %v521, %v519
    %v582 = vpack.c.bf16 %v522, %v520
    %v583 = vpack.c.bf16 %v525, %v523
    %v584 = vpack.c.bf16 %v526, %v524
    %v585 = vpack.c.bf16 %v529, %v527
    %v586 = vpack.c.bf16 %v530, %v528
    %v587 = vpack.c.bf16 %v533, %v531
    %v588 = vpack.c.bf16 %v534, %v532
    %v589 = vpack.c.bf16 %v537, %v535
    %v590 = vpack.c.bf16 %v538, %v536
    %v591 = vpack.c.bf16 %v541, %v539
    %v592 = vpack.c.bf16 %v542, %v540
    %v593 = vpack.c.bf16 %v545, %v543
    %v594 = vpack.c.bf16 %v546, %v544
    %v595 = vpack.c.bf16 %v549, %v547
    %v596 = vpack.c.bf16 %v550, %v548
    %v597 = vpack.c.bf16 %v553, %v551
    %v598 = vpack.c.bf16 %v554, %v552
    %v599 = vpack.c.bf16 %v557, %v555
    %v600 = vpack.c.bf16 %v558, %v556
    %v601 = vpack.c.bf16 %v561, %v559
    %v602 = vpack.c.bf16 %v562, %v560
    %v603 = vpack.c.bf16 %v565, %v563
    %v604 = vpack.c.bf16 %v566, %v564
    %v605 = vpack.c.bf16 %v569, %v567
    %v606 = vpack.c.bf16 %v570, %v568
    %v607 = vpack.c.bf16 %v573, %v571
    %v608 = vpack.c.bf16 %v574, %v572
    %v609 = vpack.c.bf16 %v577, %v575
    %v610 = vpack.c.bf16 %v578, %v576
    %v611 = vld [vmem:[#allocation8] sm:$0xf]
    %v612 = vld [vmem:[#allocation8 + $0x4] sm:$0xf]
    %v613 = vld [vmem:[#allocation8 + $0x8] sm:$0xf]
    %v614 = vld [vmem:[#allocation8 + $0xc] sm:$0xf]
    %v615 = vld [vmem:[#allocation8 + $0x10] sm:$0xf]
    %v616 = vld [vmem:[#allocation8 + $0x14] sm:$0xf]
    %v617 = vld [vmem:[#allocation8 + $0x18] sm:$0xf]
    %v618 = vld [vmem:[#allocation8 + $0x1c] sm:$0xf]
    %v619 = vld [vmem:[#allocation8 + $0x20] sm:$0xf]
    %v620 = vld [vmem:[#allocation8 + $0x24] sm:$0xf]
    %v621 = vld [vmem:[#allocation8 + $0x28] sm:$0xf]
    %v622 = vld [vmem:[#allocation8 + $0x2c] sm:$0xf]
    %v623 = vld [vmem:[#allocation8 + $0x30] sm:$0xf]
    %v624 = vld [vmem:[#allocation8 + $0x34] sm:$0xf]
    %v625 = vld [vmem:[#allocation8 + $0x38] sm:$0xf]
    %v626 = vld [vmem:[#allocation8 + $0x3c] sm:$0xf]
    %v627 = vld [vmem:[#allocation8 + $0x40] sm:$0xf]
    %v628 = vld [vmem:[#allocation8 + $0x44] sm:$0xf]
    %v629 = vld [vmem:[#allocation8 + $0x48] sm:$0xf]
    %v630 = vld [vmem:[#allocation8 + $0x4c] sm:$0xf]
    %v631 = vld [vmem:[#allocation8 + $0x50] sm:$0xf]
    %v632 = vld [vmem:[#allocation8 + $0x54] sm:$0xf]
    %v633 = vld [vmem:[#allocation8 + $0x58] sm:$0xf]
    %v634 = vld [vmem:[#allocation8 + $0x5c] sm:$0xf]
    %v635 = vld [vmem:[#allocation8 + $0x60] sm:$0xf]
    %v636 = vld [vmem:[#allocation8 + $0x64] sm:$0xf]
    %v637 = vld [vmem:[#allocation8 + $0x68] sm:$0xf]
    %v638 = vld [vmem:[#allocation8 + $0x6c] sm:$0xf]
    %v639 = vld [vmem:[#allocation8 + $0x70] sm:$0xf]
    %v640 = vld [vmem:[#allocation8 + $0x74] sm:$0xf]
    %v641 = vld [vmem:[#allocation8 + $0x78] sm:$0xf]
    %v642 = vld [vmem:[#allocation8 + $0x7c] sm:$0xf]
    %v643 = vld [vmem:[#allocation10] sm:$0x1]
    %v645 = vlaneseq
    %v646 = vshrl.u32 %v645, 7
    %v647 = vsub.s32 0, %v646
    %v648 = vrot.slane %v643, %v647
    %v682 = vunpack.c.l.b16 %v611
    %v683 = vunpack.c.l.b16 %v612
    %v684 = vunpack.c.l.b16 %v613
    %v685 = vunpack.c.l.b16 %v614
    %v686 = vunpack.c.l.b16 %v615
    %v687 = vunpack.c.l.b16 %v616
    %v688 = vunpack.c.l.b16 %v617
    %v689 = vunpack.c.l.b16 %v618
    %v690 = vunpack.c.l.b16 %v619
    %v691 = vunpack.c.l.b16 %v620
    %v692 = vunpack.c.l.b16 %v621
    %v693 = vunpack.c.l.b16 %v622
    %v694 = vunpack.c.l.b16 %v623
    %v695 = vunpack.c.l.b16 %v624
    %v696 = vunpack.c.l.b16 %v625
    %v697 = vunpack.c.l.b16 %v626
    %v698 = vunpack.c.l.b16 %v627
    %v699 = vunpack.c.l.b16 %v628
    %v700 = vunpack.c.l.b16 %v629
    %v701 = vunpack.c.l.b16 %v630
    %v702 = vunpack.c.l.b16 %v631
    %v703 = vunpack.c.l.b16 %v632
    %v704 = vunpack.c.l.b16 %v633
    %v705 = vunpack.c.l.b16 %v634
    %v706 = vunpack.c.l.b16 %v635
    %v707 = vunpack.c.l.b16 %v636
    %v708 = vunpack.c.l.b16 %v637
    %v709 = vunpack.c.l.b16 %v638
    %v710 = vunpack.c.l.b16 %v639
    %v711 = vunpack.c.l.b16 %v640
    %v712 = vunpack.c.l.b16 %v641
    %v713 = vunpack.c.l.b16 %v642
    %v714 = vpack.c.b16 %v683, %v682
    %v715 = vpack.c.b16 %v685, %v684
    %v716 = vpack.c.b16 %v687, %v686
    %v717 = vpack.c.b16 %v689, %v688
    %v718 = vpack.c.b16 %v691, %v690
    %v719 = vpack.c.b16 %v693, %v692
    %v720 = vpack.c.b16 %v695, %v694
    %v721 = vpack.c.b16 %v697, %v696
    %v722 = vpack.c.b16 %v699, %v698
    %v723 = vpack.c.b16 %v701, %v700
    %v724 = vpack.c.b16 %v703, %v702
    %v725 = vpack.c.b16 %v705, %v704
    %v726 = vpack.c.b16 %v707, %v706
    %v727 = vpack.c.b16 %v709, %v708
    %v728 = vpack.c.b16 %v711, %v710
    %v729 = vpack.c.b16 %v713, %v712
    %746 = vmatprep.subr.bf16.mxu0 0
    %747 = vmatpush1.bf16.msra.mxu0 %v714
    %748 = vmatprep.subr.bf16.mxu0 0
    %749 = vmatpush1.bf16.msra.mxu0 %v715
    %750 = vmatprep.subr.bf16.mxu0 0
    %751 = vmatpush1.bf16.msra.mxu0 %v716
    %752 = vmatprep.subr.bf16.mxu0 0
    %753 = vmatpush1.bf16.msra.mxu0 %v717
    %754 = vmatprep.subr.bf16.mxu0 0
    %755 = vmatpush1.bf16.msra.mxu0 %v718
    %756 = vmatprep.subr.bf16.mxu0 0
    %757 = vmatpush1.bf16.msra.mxu0 %v719
    %758 = vmatprep.subr.bf16.mxu0 0
    %759 = vmatpush1.bf16.msra.mxu0 %v720
    %760 = vmatprep.subr.bf16.mxu0 0
    %761 = vmatpush1.bf16.msra.mxu0 %v721
    %762 = vmatprep.subr.bf16.mxu0 0
    %763 = vmatpush1.bf16.msra.mxu0 %v722
    %764 = vmatprep.subr.bf16.mxu0 0
    %765 = vmatpush1.bf16.msra.mxu0 %v723
    %766 = vmatprep.subr.bf16.mxu0 0
    %767 = vmatpush1.bf16.msra.mxu0 %v724
    %768 = vmatprep.subr.bf16.mxu0 0
    %769 = vmatpush1.bf16.msra.mxu0 %v725
    %770 = vmatprep.subr.bf16.mxu0 0
    %771 = vmatpush1.bf16.msra.mxu0 %v726
    %772 = vmatprep.subr.bf16.mxu0 0
    %773 = vmatpush1.bf16.msra.mxu0 %v727
    %774 = vmatprep.subr.bf16.mxu0 0
    %775 = vmatpush1.bf16.msra.mxu0 %v728
    %776 = vmatprep.subr.bf16.mxu0 0
    %777 = vmatpush1.bf16.msra.mxu0 %v729
    %778 = vmatprep.mubr.bf16.mxu0 %v580
    %779 = vmatmul.mubr.bf16.gmra.mrb[0].mxu0 %v579
    %v780 = vpop.f32.mrb[0].mxu0
    %v781 = vadd.f32 %v648, %v780
    %v782 = vpop.f32.mrb[0].mxu0
    %v783 = vpop.f32.mrb[0].mxu0
    %v784 = vadd.f32 %v648, %v783
    %v785 = vpop.f32.mrb[0].mxu0
    %786 = vmatprep.mubr.bf16.mxu0 %v582
    %787 = vmatmul.mubr.bf16.gmra.mrb[0].mxu0 %v581
    %v788 = vpop.f32.mrb[0].mxu0
    %v789 = vadd.f32 %v648, %v788
    %v790 = vpop.f32.mrb[0].mxu0
    %v791 = vpop.f32.mrb[0].mxu0
    %v792 = vadd.f32 %v648, %v791
    %v793 = vpop.f32.mrb[0].mxu0
    %794 = vmatprep.mubr.bf16.mxu0 %v584
    %795 = vmatmul.mubr.bf16.gmra.mrb[0].mxu0 %v583
    %v796 = vpop.f32.mrb[0].mxu0
    %v797 = vadd.f32 %v648, %v796
    %v798 = vpop.f32.mrb[0].mxu0
    %v799 = vpop.f32.mrb[0].mxu0
    %v800 = vadd.f32 %v648, %v799
    %v801 = vpop.f32.mrb[0].mxu0
    %802 = vmatprep.mubr.bf16.mxu0 %v586
    %803 = vmatmul.mubr.bf16.gmra.mrb[0].mxu0 %v585
    %v804 = vpop.f32.mrb[0].mxu0
    %v805 = vadd.f32 %v648, %v804
    %v806 = vpop.f32.mrb[0].mxu0
    %v807 = vpop.f32.mrb[0].mxu0
    %v808 = vadd.f32 %v648, %v807
    %v809 = vpop.f32.mrb[0].mxu0
    %810 = vmatprep.mubr.bf16.mxu0 %v588
    %811 = vmatmul.mubr.bf16.gmra.mrb[0].mxu0 %v587
    %v812 = vpop.f32.mrb[0].mxu0
    %v813 = vadd.f32 %v648, %v812
    %v814 = vpop.f32.mrb[0].mxu0
    %v815 = vpop.f32.mrb[0].mxu0
    %v816 = vadd.f32 %v648, %v815
    %v817 = vpop.f32.mrb[0].mxu0
    %818 = vmatprep.mubr.bf16.mxu0 %v590
    %819 = vmatmul.mubr.bf16.gmra.mrb[0].mxu0 %v589
    %v820 = vpop.f32.mrb[0].mxu0
    %v821 = vadd.f32 %v648, %v820
    %v822 = vpop.f32.mrb[0].mxu0
    %v823 = vpop.f32.mrb[0].mxu0
    %v824 = vadd.f32 %v648, %v823
    %v825 = vpop.f32.mrb[0].mxu0
    %826 = vmatprep.mubr.bf16.mxu0 %v592
    %827 = vmatmul.mubr.bf16.gmra.mrb[0].mxu0 %v591
    %v828 = vpop.f32.mrb[0].mxu0
    %v829 = vadd.f32 %v648, %v828
    %v830 = vpop.f32.mrb[0].mxu0
    %v831 = vpop.f32.mrb[0].mxu0
    %v832 = vadd.f32 %v648, %v831
    %v833 = vpop.f32.mrb[0].mxu0
    %834 = vmatprep.mubr.bf16.mxu0 %v594
    %835 = vmatmul.mubr.bf16.gmra.mrb[0].mxu0 %v593
    %v836 = vpop.f32.mrb[0].mxu0
    %v837 = vadd.f32 %v648, %v836
    %v838 = vpop.f32.mrb[0].mxu0
    %v839 = vpop.f32.mrb[0].mxu0
    %v840 = vadd.f32 %v648, %v839
    %v841 = vpop.f32.mrb[0].mxu0
    %842 = vmatprep.mubr.bf16.mxu0 %v596
    %843 = vmatmul.mubr.bf16.gmra.mrb[0].mxu0 %v595
    %v844 = vpop.f32.mrb[0].mxu0
    %v845 = vadd.f32 %v648, %v844
    %v846 = vpop.f32.mrb[0].mxu0
    %v847 = vpop.f32.mrb[0].mxu0
    %v848 = vadd.f32 %v648, %v847
    %v849 = vpop.f32.mrb[0].mxu0
    %850 = vmatprep.mubr.bf16.mxu0 %v598
    %851 = vmatmul.mubr.bf16.gmra.mrb[0].mxu0 %v597
    %v852 = vpop.f32.mrb[0].mxu0
    %v853 = vadd.f32 %v648, %v852
    %v854 = vpop.f32.mrb[0].mxu0
    %v855 = vpop.f32.mrb[0].mxu0
    %v856 = vadd.f32 %v648, %v855
    %v857 = vpop.f32.mrb[0].mxu0
    %858 = vmatprep.mubr.bf16.mxu0 %v600
    %859 = vmatmul.mubr.bf16.gmra.mrb[0].mxu0 %v599
    %v860 = vpop.f32.mrb[0].mxu0
    %v861 = vadd.f32 %v648, %v860
    %v862 = vpop.f32.mrb[0].mxu0
    %v863 = vpop.f32.mrb[0].mxu0
    %v864 = vadd.f32 %v648, %v863
    %v865 = vpop.f32.mrb[0].mxu0
    %866 = vmatprep.mubr.bf16.mxu0 %v602
    %867 = vmatmul.mubr.bf16.gmra.mrb[0].mxu0 %v601
    %v868 = vpop.f32.mrb[0].mxu0
    %v869 = vadd.f32 %v648, %v868
    %v870 = vpop.f32.mrb[0].mxu0
    %v871 = vpop.f32.mrb[0].mxu0
    %v872 = vadd.f32 %v648, %v871
    %v873 = vpop.f32.mrb[0].mxu0
    %874 = vmatprep.mubr.bf16.mxu0 %v604
    %875 = vmatmul.mubr.bf16.gmra.mrb[0].mxu0 %v603
    %v876 = vpop.f32.mrb[0].mxu0
    %v877 = vadd.f32 %v648, %v876
    %v878 = vpop.f32.mrb[0].mxu0
    %v879 = vpop.f32.mrb[0].mxu0
    %v880 = vadd.f32 %v648, %v879
    %v881 = vpop.f32.mrb[0].mxu0
    %882 = vmatprep.mubr.bf16.mxu0 %v606
    %883 = vmatmul.mubr.bf16.gmra.mrb[0].mxu0 %v605
    %v884 = vpop.f32.mrb[0].mxu0
    %v885 = vadd.f32 %v648, %v884
    %v886 = vpop.f32.mrb[0].mxu0
    %v887 = vpop.f32.mrb[0].mxu0
    %v888 = vadd.f32 %v648, %v887
    %v889 = vpop.f32.mrb[0].mxu0
    %890 = vmatprep.mubr.bf16.mxu0 %v608
    %891 = vmatmul.mubr.bf16.gmra.mrb[0].mxu0 %v607
    %v892 = vpop.f32.mrb[0].mxu0
    %v893 = vadd.f32 %v648, %v892
    %v894 = vpop.f32.mrb[0].mxu0
    %v895 = vpop.f32.mrb[0].mxu0
    %v896 = vadd.f32 %v648, %v895
    %v897 = vpop.f32.mrb[0].mxu0
    %898 = vmatprep.mubr.bf16.mxu0 %v610
    %899 = vmatmul.mubr.bf16.gmra.mrb[0].mxu0 %v609
    %v900 = vpop.f32.mrb[0].mxu0
    %v901 = vadd.f32 %v648, %v900
    %v902 = vpop.f32.mrb[0].mxu0
    %v903 = vpop.f32.mrb[0].mxu0
    %v904 = vadd.f32 %v648, %v903
    %v905 = vpop.f32.mrb[0].mxu0
    %906 = vdwg.mxu0
    %907 = vst [vmem:[#allocation11] sm:$0xff] %v781
    %908 = vst [vmem:[#allocation11 + $0x8] sm:$0xff] %v784
    %909 = vst [vmem:[#allocation11 + $0x10] sm:$0xff] %v789
    %910 = vst [vmem:[#allocation11 + $0x18] sm:$0xff] %v792
    %911 = vst [vmem:[#allocation11 + $0x20] sm:$0xff] %v797
    %912 = vst [vmem:[#allocation11 + $0x28] sm:$0xff] %v800
    %913 = vst [vmem:[#allocation11 + $0x30] sm:$0xff] %v805
    %914 = vst [vmem:[#allocation11 + $0x38] sm:$0xff] %v808
    %915 = vst [vmem:[#allocation11 + $0x40] sm:$0xff] %v813
    %916 = vst [vmem:[#allocation11 + $0x48] sm:$0xff] %v816
    %917 = vst [vmem:[#allocation11 + $0x50] sm:$0xff] %v821
    %918 = vst [vmem:[#allocation11 + $0x58] sm:$0xff] %v824
    %919 = vst [vmem:[#allocation11 + $0x60] sm:$0xff] %v829
    %920 = vst [vmem:[#allocation11 + $0x68] sm:$0xff] %v832
    %921 = vst [vmem:[#allocation11 + $0x70] sm:$0xff] %v837
    %922 = vst [vmem:[#allocation11 + $0x78] sm:$0xff] %v840
    %923 = vst [vmem:[#allocation11 + $0x80] sm:$0xff] %v845
    %924 = vst [vmem:[#allocation11 + $0x88] sm:$0xff] %v848
    %925 = vst [vmem:[#allocation11 + $0x90] sm:$0xff] %v853
    %926 = vst [vmem:[#allocation11 + $0x98] sm:$0xff] %v856
    %927 = vst [vmem:[#allocation11 + $0xa0] sm:$0xff] %v861
    %928 = vst [vmem:[#allocation11 + $0xa8] sm:$0xff] %v864
    %929 = vst [vmem:[#allocation11 + $0xb0] sm:$0xff] %v869
    %930 = vst [vmem:[#allocation11 + $0xb8] sm:$0xff] %v872
    %931 = vst [vmem:[#allocation11 + $0xc0] sm:$0xff] %v877
    %932 = vst [vmem:[#allocation11 + $0xc8] sm:$0xff] %v880
    %933 = vst [vmem:[#allocation11 + $0xd0] sm:$0xff] %v885
    %934 = vst [vmem:[#allocation11 + $0xd8] sm:$0xff] %v888
    %935 = vst [vmem:[#allocation11 + $0xe0] sm:$0xff] %v893
    %936 = vst [vmem:[#allocation11 + $0xe8] sm:$0xff] %v896
    %937 = vst [vmem:[#allocation11 + $0xf0] sm:$0xff] %v901
    %938 = vst [vmem:[#allocation11 + $0xf8] sm:$0xff] %v904
    // Predicated region
    $region42: #{one_layer_relu_forward.1} parent=1 // pred_check
      _
    $region43: #{one_layer_relu_forward.1} parent=1 // pred_check_branch
      %940 = sbr.rel (0) target = $region45
    $region44: #{one_layer_relu_forward.1} parent=1 // pred_region
      %s942 = ssub.s32 4096, 4096
      %943 = vsyncadd [#allocation4], %s942
      %s944 = sshll.u32 [#allocation11], 4
      %s945 = int_to_ptr.vmem [resolvable:$true] %s944
      %950 = dma.vmem_to_hbm [thread:$0]  %s945, 4096, %s5, [#allocation4], 128, 128, 8
    $region45: #{one_layer_relu_forward.1} parent=1 // pred_fallthru
      _
    // Predicated region
    $region46: #{one_layer_relu_forward.1} parent=1 // pred_check
      _
    $region47: #{one_layer_relu_forward.1} parent=1 // pred_check_branch
      %952 = sbr.rel (0) target = $region49
    $region48: #{one_layer_relu_forward.1} parent=1 // pred_region
      %953 = dma.done [#allocation4], 4096
    $region49: #{one_layer_relu_forward.1} parent=1 // pred_fallthru
      _
    %954 = vsyncpa [#allocation3], 1
    %955 = vsyncpa [#allocation6], 1
    %956 = vsyncpa [#allocation9], 1
    %957 = vsyncpa [#allocation4], 1

</llo_original>
